<compile_context>
chip_gen: v6e
topology: v6e:2x2x1
jax: 0.10.0
libtpu: 0.0.40
codegen_flags: <defaults>
</compile_context>

<pallas_src>
import functools

import jax
import jax.numpy as jnp
from jax import lax
from jax.experimental import pallas as pl
from jax.experimental.pallas import tpu as pltpu


def _softplus(x):
    # Numerically robust softplus: max(x, 0) + log1p(exp(-|x|))  (no overflow).
    return jnp.maximum(x, 0.0) + jnp.log1p(jnp.exp(-jnp.abs(x)))


def _stats_kernel(x_ref, wmu_ref, wrho_ref, weps_ref,
                  bmu_ref, brho_ref, beps_ref,
                  rmean_ref, rvar_ref,
                  scale_ref, shift_ref, kl_ref, new_rm_ref, new_rv_ref,
                  sum_ref, sumsq_ref,
                  *, eps, momentum, sigma_0, reduce_count):
    n_i = pl.program_id(0)
    t_i = pl.program_id(1)
    is_first = jnp.logical_and(n_i == 0, t_i == 0)
    is_last = jnp.logical_and(n_i == pl.num_programs(0) - 1,
                              t_i == pl.num_programs(1) - 1)

    @pl.when(is_first)
    def _():
        sum_ref[...] = jnp.zeros_like(sum_ref)
        sumsq_ref[...] = jnp.zeros_like(sumsq_ref)

    # --- streaming per-channel partial sums (f32 accumulation) ---
    x = x_ref[...].astype(jnp.float32)                        # (C, TILE_HW)
    sum_ref[...] += jnp.sum(x, axis=-1, keepdims=True)        # (C, 1)
    sumsq_ref[...] += jnp.sum(x * x, axis=-1, keepdims=True)  # (C, 1)

    @pl.when(is_last)
    def _():
        inv_n = jnp.float32(1.0 / reduce_count)
        mean = sum_ref[...] * inv_n                           # (C, 1)
        # Biased batch variance; accumulated in f32, clamp tiny negatives.
        var = jnp.maximum(sumsq_ref[...] * inv_n - mean * mean, 0.0)

        # --- sample affine params: w = mu + softplus(rho) * eps_normal ---
        wmu, wrho, weps = wmu_ref[...], wrho_ref[...], weps_ref[...]
        bmu, brho, beps = bmu_ref[...], brho_ref[...], beps_ref[...]
        wsig = _softplus(wrho)
        bsig = _softplus(brho)
        w = wmu + wsig * weps
        b = bmu + bsig * beps

        # --- fold normalization into per-channel scale/shift ---
        inv_std = lax.rsqrt(var + eps)
        scale = inv_std * w
        scale_ref[...] = scale
        shift_ref[...] = b - mean * scale

        # --- KL(q || N(0, sigma_0^2)) summed over features ---
        log_s0 = jnp.float32(jnp.log(sigma_0))
        inv_s0_sq = jnp.float32(1.0 / (sigma_0 * sigma_0))
        kl_w = (log_s0 - jnp.log(wsig)
                + 0.5 * (wsig * wsig + wmu * wmu) * inv_s0_sq - 0.5)
        kl_b = (log_s0 - jnp.log(bsig)
                + 0.5 * (bsig * bsig + bmu * bmu) * inv_s0_sq - 0.5)
        kl_ref[...] = (jnp.sum(kl_w) + jnp.sum(kl_b)) * jnp.ones((1, 1), jnp.float32)

        # --- running-stat update (PyTorch uses the unbiased variance here) ---
        unbiased = var * jnp.float32(reduce_count / max(reduce_count - 1.0, 1.0))
        new_rm_ref[...] = (1.0 - momentum) * rmean_ref[...] + momentum * mean
        new_rv_ref[...] = (1.0 - momentum) * rvar_ref[...] + momentum * unbiased


def _apply_kernel(x_ref, scale_ref, shift_ref, y_ref):
    # Hot path: 1 mul + 1 add per element, lane-dense last dim.
    x = x_ref[...].astype(jnp.float32)                        # (C, TILE_HW)
    y_ref[...] = (x * scale_ref[...] + shift_ref[...]).astype(y_ref.dtype)


def _choose_hw_tile(hw, c, itemsize=4, target_bytes=2 * 1024 * 1024):
    """Largest lane tile that (a) is a multiple of 128 dividing hw, and
    (b) keeps a (C, tile) block under target_bytes.  If hw is not a multiple
    of 128 the lane dim must span the full extent."""
    if hw % 128 !=  0:
        return hw
    tile = 128
    cand = 128
    while cand <= hw:
        if hw % cand == 0 and cand * max(c, 8) * itemsize <= target_bytes:
            tile = cand
        cand += 128
    return tile


def gauss_vb_batchnorm(x_nchw, weight_mu, weight_rho, bias_mu, bias_rho,
                       running_mean, running_var, eps_w, eps_b,
                       *, eps=1e-5, momentum=0.1, sigma_0=1.0):
    """Training-mode forward of Gauss_VB_BatchNorm.

    Returns (y_nchw, kl_scalar, new_running_mean, new_running_var).
    """
    N, C, H, W = x_nchw.shape
    HW = H * W
    # NCHW -> (N, C, H*W): a free reshape (no transpose, no extra HBM pass).
    x3d = x_nchw.reshape(N, C, HW)
    col = lambda v: jnp.asarray(v, jnp.float32).reshape(C, 1)

    tile_hw = _choose_hw_tile(HW, C)
    grid = (N, HW // tile_hw)
    reduce_count = float(N * HW)

    x_spec = pl.BlockSpec((None, C, tile_hw), lambda n, t: (n, 0, t))
    vec_spec = pl.BlockSpec((C, 1), lambda n, t: (0, 0))
    scalar_spec = pl.BlockSpec((1, 1), lambda n, t: (0, 0))

    stats_kernel = functools.partial(
        _stats_kernel, eps=float(eps), momentum=float(momentum),
        sigma_0=float(sigma_0), reduce_count=reduce_count)

    # Pass 1: per-channel statistics + (once, at last step) params/KL/running stats.
    scale, shift, kl, new_rm, new_rv = pl.pallas_call(
        stats_kernel,
        grid=grid,
        in_specs=[x_spec] + [vec_spec] * 8,
        out_specs=(vec_spec, vec_spec, scalar_spec, vec_spec, vec_spec),
        out_shape=(
            jax.ShapeDtypeStruct((C, 1), jnp.float32),   # scale
            jax.ShapeDtypeStruct((C, 1), jnp.float32),   # shift
            jax.ShapeDtypeStruct((1, 1), jnp.float32),   # kl
            jax.ShapeDtypeStruct((C, 1), jnp.float32),   # new running_mean
            jax.ShapeDtypeStruct((C, 1), jnp.float32),   # new running_var
        ),
        scratch_shapes=[pltpu.VMEM((C, 1), jnp.float32),
                        pltpu.VMEM((C, 1), jnp.float32)],
        compiler_params=pltpu.CompilerParams(
            dimension_semantics=("arbitrary", "arbitrary"),
            vmem_limit_bytes=32 * 1024 * 1024),
    )(x3d, col(weight_mu), col(weight_rho), col(eps_w),
      col(bias_mu), col(bias_rho), col(eps_b),
      col(running_mean), col(running_var))

    # Pass 2: apply y = x * scale + shift, fully parallel (megacore-shardable).
    y3d = pl.pallas_call(
        _apply_kernel,
        grid=grid,
        in_specs=[x_spec, vec_spec, vec_spec],
        out_specs=x_spec,
        out_shape=jax.ShapeDtypeStruct((N, C, HW), x_nchw.dtype),
        compiler_params=pltpu.CompilerParams(
            dimension_semantics=("parallel", "parallel"),
            vmem_limit_bytes=32 * 1024 * 1024),
    )(x3d, scale, shift)

    y = y3d.reshape(N, C, H, W)
    return y, kl[0, 0], new_rm[:, 0], new_rv[:, 0]


def _reference(x, wmu, wrho, bmu, brho, rmean, rvar, eps_w, eps_b,
               eps=1e-5, momentum=0.1, sigma_0=1.0):
    wsig = jnp.log1p(jnp.exp(wrho))
    bsig = jnp.log1p(jnp.exp(brho))
    w = wmu + wsig * eps_w
    b = bmu + bsig * eps_b
    mean = jnp.mean(x, axis=(0, 2, 3))
    var = jnp.var(x, axis=(0, 2, 3))
    y = ((x - mean[None, :, None, None]) /
         jnp.sqrt(var[None, :, None, None] + eps)) * w[None, :, None, None] \
        + b[None, :, None, None]
    kl_w = (jnp.log(sigma_0) - jnp.log(wsig)
            + 0.5 * (wsig ** 2 + wmu ** 2) / sigma_0 ** 2 - 0.5)
    kl_b = (jnp.log(sigma_0) - jnp.log(bsig)
            + 0.5 * (bsig ** 2 + bmu ** 2) / sigma_0 ** 2 - 0.5)
    kl = jnp.sum(kl_w) + jnp.sum(kl_b)
    n = x.shape[0] * x.shape[2] * x.shape[3]
    unbiased = var * n / (n - 1)
    new_rm = (1 - momentum) * rmean + momentum * mean
    new_rv = (1 - momentum) * rvar + momentum * unbiased
    return y, kl, new_rm, new_rv


if __name__ == "__main__":
    key = jax.random.PRNGKey(0)
    N, C, H, W = 2, 4, 16, 16
    k_x, k_w, k_b = jax.random.split(key, 3)

    x = jax.random.normal(k_x, (N, C, H, W), jnp.float32) * 2.0 + 0.5

    # Deterministic parameter init matching reset_parameters():
    weight_mu = jnp.ones((C,), jnp.float32)
    weight_rho = jnp.full((C,), -6.0, jnp.float32)
    bias_mu = jnp.zeros((C,), jnp.float32)
    bias_rho = jnp.full((C,), -6.0, jnp.float32)
    running_mean = jnp.zeros((C,), jnp.float32)
    running_var = jnp.ones((C,), jnp.float32)

    # The module samples epsilon ~ N(0,1); sampled deterministically here.
    eps_w = jax.random.normal(k_w, (C,), jnp.float32)
    eps_b = jax.random.normal(k_b, (C,), jnp.float32)

    y, kl, new_rm, new_rv = gauss_vb_batchnorm(
        x, weight_mu, weight_rho, bias_mu, bias_rho,
        running_mean, running_var, eps_w, eps_b,
        eps=1e-5, momentum=0.1, sigma_0=1.0)
    jax.block_until_ready((y, kl, new_rm, new_rv))

    y_ref, kl_ref, rm_ref, rv_ref = _reference(
        x, weight_mu, weight_rho, bias_mu, bias_rho,
        running_mean, running_var, eps_w, eps_b)

    assert jnp.allclose(y, y_ref, atol=1e-4, rtol=1e-4), "output mismatch"
    assert jnp.allclose(kl, kl_ref, atol=1e-4, rtol=1e-4), "kl mismatch"
    assert jnp.allclose(new_rm, rm_ref, atol=1e-5, rtol=1e-5), "running_mean mismatch"
    assert jnp.allclose(new_rv, rv_ref, atol=1e-4, rtol=1e-4), "running_var mismatch"

    print("KERNEL_OK")
</pallas_src>

<mosaic_0001>
module attributes {stable_mosaic.version = 11 : i64} {
  func.func @_stats_kernel(%arg0: i32, %arg1: i32, %arg2: memref<1x4x256xf32, #tpu.memory_space<vmem>>, %arg3: memref<4x1xf32, #tpu.memory_space<vmem>>, %arg4: memref<4x1xf32, #tpu.memory_space<vmem>>, %arg5: memref<4x1xf32, #tpu.memory_space<vmem>>, %arg6: memref<4x1xf32, #tpu.memory_space<vmem>>, %arg7: memref<4x1xf32, #tpu.memory_space<vmem>>, %arg8: memref<4x1xf32, #tpu.memory_space<vmem>>, %arg9: memref<4x1xf32, #tpu.memory_space<vmem>>, %arg10: memref<4x1xf32, #tpu.memory_space<vmem>>, %arg11: memref<4x1xf32, #tpu.memory_space<vmem>>, %arg12: memref<4x1xf32, #tpu.memory_space<vmem>>, %arg13: memref<1x1xf32, #tpu.memory_space<vmem>>, %arg14: memref<4x1xf32, #tpu.memory_space<vmem>>, %arg15: memref<4x1xf32, #tpu.memory_space<vmem>>, %arg16: memref<4x1xf32, #tpu.memory_space<vmem>>, %arg17: memref<4x1xf32, #tpu.memory_space<vmem>>) attributes {dimension_semantics = [#tpu.dimension_semantics<arbitrary>, #tpu.dimension_semantics<arbitrary>], iteration_bounds = array<i64: 2, 1>, scalar_prefetch = 0 : i64, scratch_operands = 2 : i64, tpu.core_type = #tpu.core_type<tc>, window_params = [{transform_indices = @transform_0, window_bounds = array<i64: 1, 4, 256>}, {pipeline_mode = #tpu.pipeline_mode<synchronous>, transform_indices = @transform_1, window_bounds = array<i64: 4, 1>}, {pipeline_mode = #tpu.pipeline_mode<synchronous>, transform_indices = @transform_2, window_bounds = array<i64: 4, 1>}, {pipeline_mode = #tpu.pipeline_mode<synchronous>, transform_indices = @transform_3, window_bounds = array<i64: 4, 1>}, {pipeline_mode = #tpu.pipeline_mode<synchronous>, transform_indices = @transform_4, window_bounds = array<i64: 4, 1>}, {pipeline_mode = #tpu.pipeline_mode<synchronous>, transform_indices = @transform_5, window_bounds = array<i64: 4, 1>}, {pipeline_mode = #tpu.pipeline_mode<synchronous>, transform_indices = @transform_6, window_bounds = array<i64: 4, 1>}, {pipeline_mode = #tpu.pipeline_mode<synchronous>, transform_indices = @transform_7, window_bounds = array<i64: 4, 1>}, {pipeline_mode = #tpu.pipeline_mode<synchronous>, transform_indices = @transform_8, window_bounds = array<i64: 4, 1>}, {pipeline_mode = #tpu.pipeline_mode<synchronous>, transform_indices = @transform_9, window_bounds = array<i64: 4, 1>}, {pipeline_mode = #tpu.pipeline_mode<synchronous>, transform_indices = @transform_10, window_bounds = array<i64: 4, 1>}, {pipeline_mode = #tpu.pipeline_mode<synchronous>, transform_indices = @transform_11, window_bounds = array<i64: 1, 1>}, {pipeline_mode = #tpu.pipeline_mode<synchronous>, transform_indices = @transform_12, window_bounds = array<i64: 4, 1>}, {pipeline_mode = #tpu.pipeline_mode<synchronous>, transform_indices = @transform_13, window_bounds = array<i64: 4, 1>}]} {
    %c0_i32 = arith.constant 0 : i32
    %0 = arith.cmpi eq, %arg0, %c0_i32 : i32
    %c0_i32_0 = arith.constant 0 : i32
    %1 = arith.cmpi eq, %arg1, %c0_i32_0 : i32
    %2 = arith.andi %0, %1 : i1
    %c1_i32 = arith.constant 1 : i32
    %3 = arith.cmpi eq, %arg0, %c1_i32 : i32
    %c0_i32_1 = arith.constant 0 : i32
    %4 = arith.cmpi eq, %arg1, %c0_i32_1 : i32
    %5 = arith.andi %3, %4 : i1
    %6 = arith.extui %2 : i1 to i32
    %c0_i32_2 = arith.constant 0 : i32
    %7 = arith.cmpi ne, %6, %c0_i32_2 : i32
    scf.if %7 {
      %cst_15 = arith.constant 0.000000e+00 : f32
      %23 = vector.broadcast %cst_15 : f32 to vector<4x1xf32>
      %c0_16 = arith.constant 0 : index
      %c0_17 = arith.constant 0 : index
      %24 = vector.load %arg16[%c0_16, %c0_17] : memref<4x1xf32, #tpu.memory_space<vmem>>, vector<4x1xf32>
      tpu.vector_store %arg16[%c0_16, %c0_17], %23 {strides = array<i32>} : memref<4x1xf32, #tpu.memory_space<vmem>>, vector<4x1xf32>,
      %cst_18 = arith.constant 0.000000e+00 : f32
      %25 = vector.broadcast %cst_18 : f32 to vector<4x1xf32>
      %c0_19 = arith.constant 0 : index
      %c0_20 = arith.constant 0 : index
      %26 = vector.load %arg17[%c0_19, %c0_20] : memref<4x1xf32, #tpu.memory_space<vmem>>, vector<4x1xf32>
      tpu.vector_store %arg17[%c0_19, %c0_20], %25 {strides = array<i32>} : memref<4x1xf32, #tpu.memory_space<vmem>>, vector<4x1xf32>,
    } else {
    }
    %c0 = arith.constant 0 : index
    %c0_3 = arith.constant 0 : index
    %c0_4 = arith.constant 0 : index
    %8 = vector.load %arg2[%c0, %c0_3, %c0_4] : memref<1x4x256xf32, #tpu.memory_space<vmem>>, vector<1x4x256xf32>
    %9 = vector.shape_cast %8 : vector<1x4x256xf32> to vector<4x256xf32>
    %c0_5 = arith.constant 0 : index
    %c0_6 = arith.constant 0 : index
    %10 = vector.load %arg16[%c0_5, %c0_6] : memref<4x1xf32, #tpu.memory_space<vmem>>, vector<4x1xf32>
    %cst = arith.constant dense<0.000000e+00> : vector<4xf32>
    %11 = vector.multi_reduction <add>, %9, %cst [1] : vector<4x256xf32> to vector<4xf32>
    %12 = vector.shape_cast %11 : vector<4xf32> to vector<4x1xf32>
    %13 = arith.addf %10, %12 : vector<4x1xf32>
    %c0_7 = arith.constant 0 : index
    %c0_8 = arith.constant 0 : index
    %14 = vector.load %arg16[%c0_7, %c0_8] : memref<4x1xf32, #tpu.memory_space<vmem>>, vector<4x1xf32>
    tpu.vector_store %arg16[%c0_7, %c0_8], %13 {strides = array<i32>} : memref<4x1xf32, #tpu.memory_space<vmem>>, vector<4x1xf32>,
    %c0_9 = arith.constant 0 : index
    %c0_10 = arith.constant 0 : index
    %15 = vector.load %arg17[%c0_9, %c0_10] : memref<4x1xf32, #tpu.memory_space<vmem>>, vector<4x1xf32>
    %16 = arith.mulf %9, %9 : vector<4x256xf32>
    %cst_11 = arith.constant dense<0.000000e+00> : vector<4xf32>
    %17 = vector.multi_reduction <add>, %16, %cst_11 [1] : vector<4x256xf32> to vector<4xf32>
    %18 = vector.shape_cast %17 : vector<4xf32> to vector<4x1xf32>
    %19 = arith.addf %15, %18 : vector<4x1xf32>
    %c0_12 = arith.constant 0 : index
    %c0_13 = arith.constant 0 : index
    %20 = vector.load %arg17[%c0_12, %c0_13] : memref<4x1xf32, #tpu.memory_space<vmem>>, vector<4x1xf32>
    tpu.vector_store %arg17[%c0_12, %c0_13], %19 {strides = array<i32>} : memref<4x1xf32, #tpu.memory_space<vmem>>, vector<4x1xf32>,
    %21 = arith.extui %5 : i1 to i32
    %c0_i32_14 = arith.constant 0 : i32
    %22 = arith.cmpi ne, %21, %c0_i32_14 : i32
    scf.if %22 {
      %c0_15 = arith.constant 0 : index
      %c0_16 = arith.constant 0 : index
      %23 = vector.load %arg16[%c0_15, %c0_16] : memref<4x1xf32, #tpu.memory_space<vmem>>, vector<4x1xf32>
      %cst_17 = arith.constant 0.001953125 : f32
      %24 = vector.broadcast %cst_17 : f32 to vector<4x1xf32>
      %25 = arith.mulf %23, %24 : vector<4x1xf32>
      %c0_18 = arith.constant 0 : index
      %c0_19 = arith.constant 0 : index
      %26 = vector.load %arg17[%c0_18, %c0_19] : memref<4x1xf32, #tpu.memory_space<vmem>>, vector<4x1xf32>
      %cst_20 = arith.constant 0.001953125 : f32
      %27 = vector.broadcast %cst_20 : f32 to vector<4x1xf32>
      %28 = arith.mulf %26, %27 : vector<4x1xf32>
      %29 = arith.mulf %25, %25 : vector<4x1xf32>
      %30 = arith.subf %28, %29 : vector<4x1xf32>
      %cst_21 = arith.constant 0.000000e+00 : f32
      %31 = vector.broadcast %cst_21 : f32 to vector<4x1xf32>
      %32 = arith.maximumf %30, %31 : vector<4x1xf32>
      %c0_22 = arith.constant 0 : index
      %c0_23 = arith.constant 0 : index
      %33 = vector.load %arg3[%c0_22, %c0_23] : memref<4x1xf32, #tpu.memory_space<vmem>>, vector<4x1xf32>
      %c0_24 = arith.constant 0 : index
      %c0_25 = arith.constant 0 : index
      %34 = vector.load %arg4[%c0_24, %c0_25] : memref<4x1xf32, #tpu.memory_space<vmem>>, vector<4x1xf32>
      %c0_26 = arith.constant 0 : index
      %c0_27 = arith.constant 0 : index
      %35 = vector.load %arg5[%c0_26, %c0_27] : memref<4x1xf32, #tpu.memory_space<vmem>>, vector<4x1xf32>
      %c0_28 = arith.constant 0 : index
      %c0_29 = arith.constant 0 : index
      %36 = vector.load %arg6[%c0_28, %c0_29] : memref<4x1xf32, #tpu.memory_space<vmem>>, vector<4x1xf32>
      %c0_30 = arith.constant 0 : index
      %c0_31 = arith.constant 0 : index
      %37 = vector.load %arg7[%c0_30, %c0_31] : memref<4x1xf32, #tpu.memory_space<vmem>>, vector<4x1xf32>
      %c0_32 = arith.constant 0 : index
      %c0_33 = arith.constant 0 : index
      %38 = vector.load %arg8[%c0_32, %c0_33] : memref<4x1xf32, #tpu.memory_space<vmem>>, vector<4x1xf32>
      %cst_34 = arith.constant 0.000000e+00 : f32
      %39 = vector.broadcast %cst_34 : f32 to vector<4x1xf32>
      %40 = arith.maximumf %34, %39 : vector<4x1xf32>
      %41 = math.absf %34 : vector<4x1xf32>
      %cst_35 = arith.constant 0.000000e+00 : f32
      %42 = vector.broadcast %cst_35 : f32 to vector<4x1xf32>
      %43 = arith.subf %42, %41 : vector<4x1xf32>
      %44 = math.exp %43 : vector<4x1xf32>
      %45 = math.log1p %44 : vector<4x1xf32>
      %46 = arith.addf %40, %45 : vector<4x1xf32>
      %cst_36 = arith.constant 0.000000e+00 : f32
      %47 = vector.broadcast %cst_36 : f32 to vector<4x1xf32>
      %48 = arith.maximumf %37, %47 : vector<4x1xf32>
      %49 = math.absf %37 : vector<4x1xf32>
      %cst_37 = arith.constant 0.000000e+00 : f32
      %50 = vector.broadcast %cst_37 : f32 to vector<4x1xf32>
      %51 = arith.subf %50, %49 : vector<4x1xf32>
      %52 = math.exp %51 : vector<4x1xf32>
      %53 = math.log1p %52 : vector<4x1xf32>
      %54 = arith.addf %48, %53 : vector<4x1xf32>
      %55 = arith.mulf %46, %35 : vector<4x1xf32>
      %56 = arith.addf %33, %55 : vector<4x1xf32>
      %57 = arith.mulf %54, %38 : vector<4x1xf32>
      %58 = arith.addf %36, %57 : vector<4x1xf32>
      %cst_38 = arith.constant 9.99999974E-6 : f32
      %59 = vector.broadcast %cst_38 : f32 to vector<4x1xf32>
      %60 = arith.addf %32, %59 : vector<4x1xf32>
      %61 = math.rsqrt %60 : vector<4x1xf32>
      %62 = arith.mulf %61, %56 : vector<4x1xf32>
      %c0_39 = arith.constant 0 : index
      %c0_40 = arith.constant 0 : index
      %63 = vector.load %arg11[%c0_39, %c0_40] : memref<4x1xf32, #tpu.memory_space<vmem>>, vector<4x1xf32>
      tpu.vector_store %arg11[%c0_39, %c0_40], %62 {strides = array<i32>} : memref<4x1xf32, #tpu.memory_space<vmem>>, vector<4x1xf32>,
      %64 = arith.mulf %25, %62 : vector<4x1xf32>
      %65 = arith.subf %58, %64 : vector<4x1xf32>
      %c0_41 = arith.constant 0 : index
      %c0_42 = arith.constant 0 : index
      %66 = vector.load %arg12[%c0_41, %c0_42] : memref<4x1xf32, #tpu.memory_space<vmem>>, vector<4x1xf32>
      tpu.vector_store %arg12[%c0_41, %c0_42], %65 {strides = array<i32>} : memref<4x1xf32, #tpu.memory_space<vmem>>, vector<4x1xf32>,
      %cst_43 = arith.constant 1.000000e+00 : f32
      %67 = math.log %cst_43 : f32
      %68 = math.log %46 : vector<4x1xf32>
      %69 = vector.broadcast %67 : f32 to vector<4x1xf32>
      %70 = arith.subf %69, %68 : vector<4x1xf32>
      %71 = arith.mulf %46, %46 : vector<4x1xf32>
      %72 = arith.mulf %33, %33 : vector<4x1xf32>
      %73 = arith.addf %71, %72 : vector<4x1xf32>
      %cst_44 = arith.constant 5.000000e-01 : f32
      %74 = vector.broadcast %cst_44 : f32 to vector<4x1xf32>
      %75 = arith.mulf %74, %73 : vector<4x1xf32>
      %cst_45 = arith.constant 1.000000e+00 : f32
      %76 = vector.broadcast %cst_45 : f32 to vector<4x1xf32>
      %77 = arith.mulf %75, %76 : vector<4x1xf32>
      %78 = arith.addf %70, %77 : vector<4x1xf32>
      %cst_46 = arith.constant 5.000000e-01 : f32
      %79 = vector.broadcast %cst_46 : f32 to vector<4x1xf32>
      %80 = arith.subf %78, %79 : vector<4x1xf32>
      %81 = math.log %54 : vector<4x1xf32>
      %82 = vector.broadcast %67 : f32 to vector<4x1xf32>
      %83 = arith.subf %82, %81 : vector<4x1xf32>
      %84 = arith.mulf %54, %54 : vector<4x1xf32>
      %85 = arith.mulf %36, %36 : vector<4x1xf32>
      %86 = arith.addf %84, %85 : vector<4x1xf32>
      %cst_47 = arith.constant 5.000000e-01 : f32
      %87 = vector.broadcast %cst_47 : f32 to vector<4x1xf32>
      %88 = arith.mulf %87, %86 : vector<4x1xf32>
      %cst_48 = arith.constant 1.000000e+00 : f32
      %89 = vector.broadcast %cst_48 : f32 to vector<4x1xf32>
      %90 = arith.mulf %88, %89 : vector<4x1xf32>
      %91 = arith.addf %83, %90 : vector<4x1xf32>
      %cst_49 = arith.constant 5.000000e-01 : f32
      %92 = vector.broadcast %cst_49 : f32 to vector<4x1xf32>
      %93 = arith.subf %91, %92 : vector<4x1xf32>
      %94 = vector.shape_cast %80 : vector<4x1xf32> to vector<1x4x1xf32>
      %cst_50 = arith.constant dense<0.000000e+00> : vector<1xf32>
      %95 = vector.multi_reduction <add>, %94, %cst_50 [1, 2] : vector<1x4x1xf32> to vector<1xf32>
      %96 = vector.shape_cast %95 : vector<1xf32> to vector<1x1x1xf32>
      %97 = vector.extract %96[0, 0, 0] : f32 from vector<1x1x1xf32>
      %98 = vector.shape_cast %93 : vector<4x1xf32> to vector<1x4x1xf32>
      %cst_51 = arith.constant dense<0.000000e+00> : vector<1xf32>
      %99 = vector.multi_reduction <add>, %98, %cst_51 [1, 2] : vector<1x4x1xf32> to vector<1xf32>
      %100 = vector.shape_cast %99 : vector<1xf32> to vector<1x1x1xf32>
      %101 = vector.extract %100[0, 0, 0] : f32 from vector<1x1x1xf32>
      %102 = arith.addf %97, %101 : f32
      %cst_52 = arith.constant 1.000000e+00 : f32
      %103 = vector.broadcast %cst_52 : f32 to vector<1x1xf32>
      %104 = vector.broadcast %102 : f32 to vector<1x1xf32>
      %105 = arith.mulf %104, %103 : vector<1x1xf32>
      %c0_53 = arith.constant 0 : index
      %c0_54 = arith.constant 0 : index
      %106 = vector.load %arg13[%c0_53, %c0_54] : memref<1x1xf32, #tpu.memory_space<vmem>>, vector<1x1xf32>
      tpu.vector_store %arg13[%c0_53, %c0_54], %105 {strides = array<i32>} : memref<1x1xf32, #tpu.memory_space<vmem>>, vector<1x1xf32>,
      %cst_55 = arith.constant 1.00195694 : f32
      %107 = vector.broadcast %cst_55 : f32 to vector<4x1xf32>
      %108 = arith.mulf %32, %107 : vector<4x1xf32>
      %c0_56 = arith.constant 0 : index
      %c0_57 = arith.constant 0 : index
      %109 = vector.load %arg9[%c0_56, %c0_57] : memref<4x1xf32, #tpu.memory_space<vmem>>, vector<4x1xf32>
      %cst_58 = arith.constant 0.899999976 : f32
      %110 = vector.broadcast %cst_58 : f32 to vector<4x1xf32>
      %111 = arith.mulf %110, %109 : vector<4x1xf32>
      %cst_59 = arith.constant 1.000000e-01 : f32
      %112 = vector.broadcast %cst_59 : f32 to vector<4x1xf32>
      %113 = arith.mulf %112, %25 : vector<4x1xf32>
      %114 = arith.addf %111, %113 : vector<4x1xf32>
      %c0_60 = arith.constant 0 : index
      %c0_61 = arith.constant 0 : index
      %115 = vector.load %arg14[%c0_60, %c0_61] : memref<4x1xf32, #tpu.memory_space<vmem>>, vector<4x1xf32>
      tpu.vector_store %arg14[%c0_60, %c0_61], %114 {strides = array<i32>} : memref<4x1xf32, #tpu.memory_space<vmem>>, vector<4x1xf32>,
      %c0_62 = arith.constant 0 : index
      %c0_63 = arith.constant 0 : index
      %116 = vector.load %arg10[%c0_62, %c0_63] : memref<4x1xf32, #tpu.memory_space<vmem>>, vector<4x1xf32>
      %cst_64 = arith.constant 0.899999976 : f32
      %117 = vector.broadcast %cst_64 : f32 to vector<4x1xf32>
      %118 = arith.mulf %117, %116 : vector<4x1xf32>
      %cst_65 = arith.constant 1.000000e-01 : f32
      %119 = vector.broadcast %cst_65 : f32 to vector<4x1xf32>
      %120 = arith.mulf %119, %108 : vector<4x1xf32>
      %121 = arith.addf %118, %120 : vector<4x1xf32>
      %c0_66 = arith.constant 0 : index
      %c0_67 = arith.constant 0 : index
      %122 = vector.load %arg15[%c0_66, %c0_67] : memref<4x1xf32, #tpu.memory_space<vmem>>, vector<4x1xf32>
      tpu.vector_store %arg15[%c0_66, %c0_67], %121 {strides = array<i32>} : memref<4x1xf32, #tpu.memory_space<vmem>>, vector<4x1xf32>,
    } else {
    }
    return
  }
  func.func @transform_0(%arg0: i32, %arg1: i32) -> (i32, i32, i32) {
    %c0_i32 = arith.constant 0 : i32
    %c0_i32_0 = arith.constant 0 : i32
    return %arg0, %c0_i32, %arg1 : i32, i32, i32
  }
  func.func @transform_1(%arg0: i32, %arg1: i32) -> (i32, i32) {
    %c0_i32 = arith.constant 0 : i32
    %c0_i32_0 = arith.constant 0 : i32
    %c0_i32_1 = arith.constant 0 : i32
    return %c0_i32, %c0_i32_0 : i32, i32
  }
  func.func @transform_2(%arg0: i32, %arg1: i32) -> (i32, i32) {
    %c0_i32 = arith.constant 0 : i32
    %c0_i32_0 = arith.constant 0 : i32
    %c0_i32_1 = arith.constant 0 : i32
    return %c0_i32, %c0_i32_0 : i32, i32
  }
  func.func @transform_3(%arg0: i32, %arg1: i32) -> (i32, i32) {
    %c0_i32 = arith.constant 0 : i32
    %c0_i32_0 = arith.constant 0 : i32
    %c0_i32_1 = arith.constant 0 : i32
    return %c0_i32, %c0_i32_0 : i32, i32
  }
  func.func @transform_4(%arg0: i32, %arg1: i32) -> (i32, i32) {
    %c0_i32 = arith.constant 0 : i32
    %c0_i32_0 = arith.constant 0 : i32
    %c0_i32_1 = arith.constant 0 : i32
    return %c0_i32, %c0_i32_0 : i32, i32
  }
  func.func @transform_5(%arg0: i32, %arg1: i32) -> (i32, i32) {
    %c0_i32 = arith.constant 0 : i32
    %c0_i32_0 = arith.constant 0 : i32
    %c0_i32_1 = arith.constant 0 : i32
    return %c0_i32, %c0_i32_0 : i32, i32
  }
  func.func @transform_6(%arg0: i32, %arg1: i32) -> (i32, i32) {
    %c0_i32 = arith.constant 0 : i32
    %c0_i32_0 = arith.constant 0 : i32
    %c0_i32_1 = arith.constant 0 : i32
    return %c0_i32, %c0_i32_0 : i32, i32
  }
  func.func @transform_7(%arg0: i32, %arg1: i32) -> (i32, i32) {
    %c0_i32 = arith.constant 0 : i32
    %c0_i32_0 = arith.constant 0 : i32
    %c0_i32_1 = arith.constant 0 : i32
    return %c0_i32, %c0_i32_0 : i32, i32
  }
  func.func @transform_8(%arg0: i32, %arg1: i32) -> (i32, i32) {
    %c0_i32 = arith.constant 0 : i32
    %c0_i32_0 = arith.constant 0 : i32
    %c0_i32_1 = arith.constant 0 : i32
    return %c0_i32, %c0_i32_0 : i32, i32
  }
  func.func @transform_9(%arg0: i32, %arg1: i32) -> (i32, i32) {
    %c0_i32 = arith.constant 0 : i32
    %c0_i32_0 = arith.constant 0 : i32
    %c0_i32_1 = arith.constant 0 : i32
    return %c0_i32, %c0_i32_0 : i32, i32
  }
  func.func @transform_10(%arg0: i32, %arg1: i32) -> (i32, i32) {
    %c0_i32 = arith.constant 0 : i32
    %c0_i32_0 = arith.constant 0 : i32
    %c0_i32_1 = arith.constant 0 : i32
    return %c0_i32, %c0_i32_0 : i32, i32
  }
  func.func @transform_11(%arg0: i32, %arg1: i32) -> (i32, i32) {
    %c0_i32 = arith.constant 0 : i32
    %c0_i32_0 = arith.constant 0 : i32
    %c0_i32_1 = arith.constant 0 : i32
    return %c0_i32, %c0_i32_0 : i32, i32
  }
  func.func @transform_12(%arg0: i32, %arg1: i32) -> (i32, i32) {
    %c0_i32 = arith.constant 0 : i32
    %c0_i32_0 = arith.constant 0 : i32
    %c0_i32_1 = arith.constant 0 : i32
    return %c0_i32, %c0_i32_0 : i32, i32
  }
  func.func @transform_13(%arg0: i32, %arg1: i32) -> (i32, i32) {
    %c0_i32 = arith.constant 0 : i32
    %c0_i32_0 = arith.constant 0 : i32
    %c0_i32_1 = arith.constant 0 : i32
    return %c0_i32, %c0_i32_0 : i32, i32
  }
}

</mosaic_0001>

<llo_original>
// kernel: tpu_custom_call.1
$region0: #{tpu_custom_call.1}
  #allocation0 [shape = 'u32[]', space=smem, size = 0x4, offset = 0x4, fixed_abs, tag = 'smem constant byte address 0x4 - core index']
  #allocation1 [shape = 'u32[144,128]{1,0:T(1,128)}', space=vmem, size = 0x12000, scoped, tag = 'internal scratch']
  #allocation2 [shape = 'f32[4,1]{1,0:T(4,128)}', space=vmem, size = 0x800, scoped, tag = 'scratch operand']
  #allocation3 [shape = 'f32[4,1]{1,0:T(4,128)}', space=vmem, size = 0x800, scoped, tag = 'scratch operand']
  %s0 = inlined_call_operand.vmem [shape: f32[2,4,256], index: 0, kind: input, shape index: {}]
  %s1 = inlined_call_operand.vmem [shape: f32[4,1], index: 1, kind: input, shape index: {}]
  %s2 = inlined_call_operand.vmem [shape: f32[4,1], index: 2, kind: input, shape index: {}]
  %s3 = inlined_call_operand.vmem [shape: f32[4,1], index: 3, kind: input, shape index: {}]
  %s4 = inlined_call_operand.vmem [shape: f32[4,1], index: 4, kind: input, shape index: {}]
  %s5 = inlined_call_operand.vmem [shape: f32[4,1], index: 5, kind: input, shape index: {}]
  %s6 = inlined_call_operand.vmem [shape: f32[4,1], index: 6, kind: input, shape index: {}]
  %s7 = inlined_call_operand.vmem [shape: f32[4,1], index: 7, kind: input, shape index: {}]
  %s8 = inlined_call_operand.vmem [shape: f32[4,1], index: 8, kind: input, shape index: {}]
  %s9 = inlined_call_operand.vmem [shape: f32[4,1], index: 9, kind: output, shape index: {0}]
  %s10 = inlined_call_operand.vmem [shape: f32[4,1], index: 10, kind: output, shape index: {1}]
  %s11 = inlined_call_operand.hbm [shape: f32[1,1], index: 11, kind: output, shape index: {2}]
  %s12 = inlined_call_operand.vmem [shape: f32[4,1], index: 12, kind: output, shape index: {3}]
  %s13 = inlined_call_operand.vmem [shape: f32[4,1], index: 13, kind: output, shape index: {4}]
  %14 = xla_tuple %s9, %s10, %s11, %s12, %s13
  %s15 = sld [smem:[#allocation0]]
  $region109: #{tpu_custom_call.1} parent=0
    _
  %s17 = ssub.s32 1, %s15
  %s18 = scalar_select 0, %s17, %s15
  $region1: #{tpu_custom_call.1} parent=0
    #allocation4 [shape = 'u8[512]{0}', space=vmem, size = 0x400, scoped, tag = 'output window, operand 2, single buffered']
    #allocation5 [shape = 's32[2]{0}', space=sflag, size = 0x8, scoped, tag = 'scoped memory for tpu_custom_call.1']
    %19 = vsyncpa [#allocation5], 0
    loop: start=0, step=1, limit=4
    $region2: #{tpu_custom_call.1} parent=1 // loop_pre_header
      _
    $region3: #{tpu_custom_call.1} parent=1 // loop_header
      %s21 = sphi 0, %s25
      %p22 = scmp.ge.s32.totalorder %s21, 4
      %s28 = sphi 0, %s40
      %s29 = sphi 0, %s36
      %s30 = sphi 0, %s28
      %s31 = sphi 0, %s29
      %s32 = sphi 0, %s30
      %s33 = sphi 0, %s31
      %s45 = sphi 0, %s47
      %s48 = sphi 0, %s45
      %s49 = sphi 0, %s48
      %s65 = sphi 0, %s49
      %s69 = sphi 0, %s69
      %s71 = sphi 0, %s69
      %s72 = sphi 0, %s71
      %s86 = sphi 0, %s72
      %s90 = sphi 0, %s90
      %s92 = sphi 0, %s90
      %s93 = sphi 0, %s92
      %s107 = sphi 0, %s93
      %s111 = sphi 0, %s111
      %s113 = sphi 0, %s111
      %s114 = sphi 0, %s113
      %s128 = sphi 0, %s114
      %s132 = sphi 0, %s132
      %s134 = sphi 0, %s132
      %s135 = sphi 0, %s134
      %s149 = sphi 0, %s135
      %s153 = sphi 0, %s153
      %s155 = sphi 0, %s153
      %s156 = sphi 0, %s155
      %s170 = sphi 0, %s156
      %s174 = sphi 0, %s174
      %s176 = sphi 0, %s174
      %s177 = sphi 0, %s176
      %s191 = sphi 0, %s177
      %s195 = sphi 0, %s195
      %s197 = sphi 0, %s195
      %s198 = sphi 0, %s197
      %s212 = sphi 0, %s198
      %s216 = sphi 0, %s216
      %s218 = sphi 0, %s216
      %s219 = sphi 0, %s218
      %s233 = sphi 0, %s219
      %s237 = sphi 0, %s237
      %s239 = sphi 0, %s237
      %s240 = sphi 0, %s239
      %s254 = sphi 0, %s240
      %s258 = sphi 0, %s258
      %s260 = sphi 0, %s258
      %s261 = sphi 0, %s260
      %s275 = sphi 0, %s261
      %s279 = sphi 0, %s279
      %s281 = sphi 0, %s279
      %s282 = sphi 0, %s281
      %s296 = sphi 0, %s282
      %s300 = sphi 0, %s300
      %s302 = sphi 0, %s300
      %s303 = sphi 0, %s302
      %s317 = sphi 0, %s303
      %s321 = sphi 0, %s321
      %s323 = sphi 0, %s321
      %s324 = sphi 0, %s323
      %s338 = sphi 0, %s324
    $region4: #{tpu_custom_call.1} parent=1 // loop_header_branch
      %24 = sbr.rel (%p22) target = $region8
    $region5: #{tpu_custom_call.1} parent=1 // loop_body
      %s26 = ssub.s32 %s21, 1
      %s27 = ssub.s32 %s21, 2
      %s34 = sadd.s32 1, %s29
      %p35 = scmp.ge.s32.totalorder %s34, 1
      %s36 = scalar_select %p35, 0, %s34
      %s37 = sadd.s32 1, %s28
      %s38 = scalar_select %p35, %s37, %s28
      %p39 = scmp.ge.s32.totalorder %s38, 2
      %s40 = scalar_select %p39, 0, %s38
      %s41 = ssub.s32 %s28, %s40
      %s42 = ssub.s32 %s29, %s36
      %s43 = sor.u32 %s41, %s42
      %p44 = scmp.eq.s32.totalorder %s43, 0
      %s46 = sadd.s32 %s45, 1
      %s47 = scalar_select %p44, %s45, %s46
      %p50 = pneg %p44
      %p51 = scmp.eq.s32.totalorder %s21, 1
      %p52 = por %p50, %p51
      %p53 = scmp.ne.s32.totalorder %s45, %s48
      %p54 = scmp.eq.s32.totalorder %s21, 0
      %p55 = por %p53, %p54
      %p56 = scmp.ne.s32.totalorder %s45, %s48
      %p57 = scmp.eq.s32.totalorder %s26, 1
      %p58 = por %p56, %p57
      %p59 = scmp.ne.s32.totalorder %s48, %s49
      %p60 = scmp.eq.s32.totalorder %s26, 0
      %p61 = por %p59, %p60
      %p62 = scmp.ne.s32.totalorder %s48, %s49
      %p63 = scmp.eq.s32.totalorder %s27, 1
      %p64 = por %p62, %p63
      %p66 = scmp.ne.s32.totalorder %s49, %s65
      %p67 = scmp.eq.s32.totalorder %s27, 0
      %p68 = por %p66, %p67
      %s70 = sadd.s32 %s69, 1
      %p73 = scmp.eq.s32.totalorder %s21, 1
      %p74 = scmp.ne.s32.totalorder %s69, %s71
      %p75 = scmp.eq.s32.totalorder %s21, 0
      %p76 = por %p74, %p75
      %p77 = scmp.ne.s32.totalorder %s69, %s71
      %p78 = scmp.eq.s32.totalorder %s26, 1
      %p79 = por %p77, %p78
      %p80 = scmp.ne.s32.totalorder %s71, %s72
      %p81 = scmp.eq.s32.totalorder %s26, 0
      %p82 = por %p80, %p81
      %p83 = scmp.ne.s32.totalorder %s71, %s72
      %p84 = scmp.eq.s32.totalorder %s27, 1
      %p85 = por %p83, %p84
      %p87 = scmp.ne.s32.totalorder %s72, %s86
      %p88 = scmp.eq.s32.totalorder %s27, 0
      %p89 = por %p87, %p88
      %s91 = sadd.s32 %s90, 1
      %p94 = scmp.eq.s32.totalorder %s21, 1
      %p95 = scmp.ne.s32.totalorder %s90, %s92
      %p96 = scmp.eq.s32.totalorder %s21, 0
      %p97 = por %p95, %p96
      %p98 = scmp.ne.s32.totalorder %s90, %s92
      %p99 = scmp.eq.s32.totalorder %s26, 1
      %p100 = por %p98, %p99
      %p101 = scmp.ne.s32.totalorder %s92, %s93
      %p102 = scmp.eq.s32.totalorder %s26, 0
      %p103 = por %p101, %p102
      %p104 = scmp.ne.s32.totalorder %s92, %s93
      %p105 = scmp.eq.s32.totalorder %s27, 1
      %p106 = por %p104, %p105
      %p108 = scmp.ne.s32.totalorder %s93, %s107
      %p109 = scmp.eq.s32.totalorder %s27, 0
      %p110 = por %p108, %p109
      %s112 = sadd.s32 %s111, 1
      %p115 = scmp.eq.s32.totalorder %s21, 1
      %p116 = scmp.ne.s32.totalorder %s111, %s113
      %p117 = scmp.eq.s32.totalorder %s21, 0
      %p118 = por %p116, %p117
      %p119 = scmp.ne.s32.totalorder %s111, %s113
      %p120 = scmp.eq.s32.totalorder %s26, 1
      %p121 = por %p119, %p120
      %p122 = scmp.ne.s32.totalorder %s113, %s114
      %p123 = scmp.eq.s32.totalorder %s26, 0
      %p124 = por %p122, %p123
      %p125 = scmp.ne.s32.totalorder %s113, %s114
      %p126 = scmp.eq.s32.totalorder %s27, 1
      %p127 = por %p125, %p126
      %p129 = scmp.ne.s32.totalorder %s114, %s128
      %p130 = scmp.eq.s32.totalorder %s27, 0
      %p131 = por %p129, %p130
      %s133 = sadd.s32 %s132, 1
      %p136 = scmp.eq.s32.totalorder %s21, 1
      %p137 = scmp.ne.s32.totalorder %s132, %s134
      %p138 = scmp.eq.s32.totalorder %s21, 0
      %p139 = por %p137, %p138
      %p140 = scmp.ne.s32.totalorder %s132, %s134
      %p141 = scmp.eq.s32.totalorder %s26, 1
      %p142 = por %p140, %p141
      %p143 = scmp.ne.s32.totalorder %s134, %s135
      %p144 = scmp.eq.s32.totalorder %s26, 0
      %p145 = por %p143, %p144
      %p146 = scmp.ne.s32.totalorder %s134, %s135
      %p147 = scmp.eq.s32.totalorder %s27, 1
      %p148 = por %p146, %p147
      %p150 = scmp.ne.s32.totalorder %s135, %s149
      %p151 = scmp.eq.s32.totalorder %s27, 0
      %p152 = por %p150, %p151
      %s154 = sadd.s32 %s153, 1
      %p157 = scmp.eq.s32.totalorder %s21, 1
      %p158 = scmp.ne.s32.totalorder %s153, %s155
      %p159 = scmp.eq.s32.totalorder %s21, 0
      %p160 = por %p158, %p159
      %p161 = scmp.ne.s32.totalorder %s153, %s155
      %p162 = scmp.eq.s32.totalorder %s26, 1
      %p163 = por %p161, %p162
      %p164 = scmp.ne.s32.totalorder %s155, %s156
      %p165 = scmp.eq.s32.totalorder %s26, 0
      %p166 = por %p164, %p165
      %p167 = scmp.ne.s32.totalorder %s155, %s156
      %p168 = scmp.eq.s32.totalorder %s27, 1
      %p169 = por %p167, %p168
      %p171 = scmp.ne.s32.totalorder %s156, %s170
      %p172 = scmp.eq.s32.totalorder %s27, 0
      %p173 = por %p171, %p172
      %s175 = sadd.s32 %s174, 1
      %p178 = scmp.eq.s32.totalorder %s21, 1
      %p179 = scmp.ne.s32.totalorder %s174, %s176
      %p180 = scmp.eq.s32.totalorder %s21, 0
      %p181 = por %p179, %p180
      %p182 = scmp.ne.s32.totalorder %s174, %s176
      %p183 = scmp.eq.s32.totalorder %s26, 1
      %p184 = por %p182, %p183
      %p185 = scmp.ne.s32.totalorder %s176, %s177
      %p186 = scmp.eq.s32.totalorder %s26, 0
      %p187 = por %p185, %p186
      %p188 = scmp.ne.s32.totalorder %s176, %s177
      %p189 = scmp.eq.s32.totalorder %s27, 1
      %p190 = por %p188, %p189
      %p192 = scmp.ne.s32.totalorder %s177, %s191
      %p193 = scmp.eq.s32.totalorder %s27, 0
      %p194 = por %p192, %p193
      %s196 = sadd.s32 %s195, 1
      %p199 = scmp.eq.s32.totalorder %s21, 1
      %p200 = scmp.ne.s32.totalorder %s195, %s197
      %p201 = scmp.eq.s32.totalorder %s21, 0
      %p202 = por %p200, %p201
      %p203 = scmp.ne.s32.totalorder %s195, %s197
      %p204 = scmp.eq.s32.totalorder %s26, 1
      %p205 = por %p203, %p204
      %p206 = scmp.ne.s32.totalorder %s197, %s198
      %p207 = scmp.eq.s32.totalorder %s26, 0
      %p208 = por %p206, %p207
      %p209 = scmp.ne.s32.totalorder %s197, %s198
      %p210 = scmp.eq.s32.totalorder %s27, 1
      %p211 = por %p209, %p210
      %p213 = scmp.ne.s32.totalorder %s198, %s212
      %p214 = scmp.eq.s32.totalorder %s27, 0
      %p215 = por %p213, %p214
      %s217 = sadd.s32 %s216, 1
      %p220 = scmp.eq.s32.totalorder %s21, 1
      %p221 = scmp.ne.s32.totalorder %s216, %s218
      %p222 = scmp.eq.s32.totalorder %s21, 0
      %p223 = por %p221, %p222
      %p224 = scmp.ne.s32.totalorder %s216, %s218
      %p225 = scmp.eq.s32.totalorder %s26, 1
      %p226 = por %p224, %p225
      %p227 = scmp.ne.s32.totalorder %s218, %s219
      %p228 = scmp.eq.s32.totalorder %s26, 0
      %p229 = por %p227, %p228
      %p230 = scmp.ne.s32.totalorder %s218, %s219
      %p231 = scmp.eq.s32.totalorder %s27, 1
      %p232 = por %p230, %p231
      %p234 = scmp.ne.s32.totalorder %s219, %s233
      %p235 = scmp.eq.s32.totalorder %s27, 0
      %p236 = por %p234, %p235
      %s238 = sadd.s32 %s237, 1
      %p241 = scmp.eq.s32.totalorder %s21, 1
      %p242 = scmp.ne.s32.totalorder %s237, %s239
      %p243 = scmp.eq.s32.totalorder %s21, 0
      %p244 = por %p242, %p243
      %p245 = scmp.ne.s32.totalorder %s237, %s239
      %p246 = scmp.eq.s32.totalorder %s26, 1
      %p247 = por %p245, %p246
      %p248 = scmp.ne.s32.totalorder %s239, %s240
      %p249 = scmp.eq.s32.totalorder %s26, 0
      %p250 = por %p248, %p249
      %p251 = scmp.ne.s32.totalorder %s239, %s240
      %p252 = scmp.eq.s32.totalorder %s27, 1
      %p253 = por %p251, %p252
      %p255 = scmp.ne.s32.totalorder %s240, %s254
      %p256 = scmp.eq.s32.totalorder %s27, 0
      %p257 = por %p255, %p256
      %s259 = sadd.s32 %s258, 1
      %p262 = scmp.eq.s32.totalorder %s21, 1
      %p263 = scmp.ne.s32.totalorder %s258, %s260
      %p264 = scmp.eq.s32.totalorder %s21, 0
      %p265 = por %p263, %p264
      %p266 = scmp.ne.s32.totalorder %s258, %s260
      %p267 = scmp.eq.s32.totalorder %s26, 1
      %p268 = por %p266, %p267
      %p269 = scmp.ne.s32.totalorder %s260, %s261
      %p270 = scmp.eq.s32.totalorder %s26, 0
      %p271 = por %p269, %p270
      %p272 = scmp.ne.s32.totalorder %s260, %s261
      %p273 = scmp.eq.s32.totalorder %s27, 1
      %p274 = por %p272, %p273
      %p276 = scmp.ne.s32.totalorder %s261, %s275
      %p277 = scmp.eq.s32.totalorder %s27, 0
      %p278 = por %p276, %p277
      %s280 = sadd.s32 %s279, 1
      %p283 = scmp.eq.s32.totalorder %s21, 1
      %p284 = scmp.ne.s32.totalorder %s279, %s281
      %p285 = scmp.eq.s32.totalorder %s21, 0
      %p286 = por %p284, %p285
      %p287 = scmp.ne.s32.totalorder %s279, %s281
      %p288 = scmp.eq.s32.totalorder %s26, 1
      %p289 = por %p287, %p288
      %p290 = scmp.ne.s32.totalorder %s281, %s282
      %p291 = scmp.eq.s32.totalorder %s26, 0
      %p292 = por %p290, %p291
      %p293 = scmp.ne.s32.totalorder %s281, %s282
      %p294 = scmp.eq.s32.totalorder %s27, 1
      %p295 = por %p293, %p294
      %p297 = scmp.ne.s32.totalorder %s282, %s296
      %p298 = scmp.eq.s32.totalorder %s27, 0
      %p299 = por %p297, %p298
      %s301 = sadd.s32 %s300, 1
      %p304 = scmp.eq.s32.totalorder %s21, 1
      %p305 = scmp.ne.s32.totalorder %s300, %s302
      %p306 = scmp.eq.s32.totalorder %s21, 0
      %p307 = por %p305, %p306
      %p308 = scmp.ne.s32.totalorder %s300, %s302
      %p309 = scmp.eq.s32.totalorder %s26, 1
      %p310 = por %p308, %p309
      %p311 = scmp.ne.s32.totalorder %s302, %s303
      %p312 = scmp.eq.s32.totalorder %s26, 0
      %p313 = por %p311, %p312
      %p314 = scmp.ne.s32.totalorder %s302, %s303
      %p315 = scmp.eq.s32.totalorder %s27, 1
      %p316 = por %p314, %p315
      %p318 = scmp.ne.s32.totalorder %s303, %s317
      %p319 = scmp.eq.s32.totalorder %s27, 0
      %p320 = por %p318, %p319
      %s322 = sadd.s32 %s321, 1
      %p325 = scmp.eq.s32.totalorder %s21, 1
      %p326 = scmp.ne.s32.totalorder %s321, %s323
      %p327 = scmp.eq.s32.totalorder %s21, 0
      %p328 = por %p326, %p327
      %p329 = scmp.ne.s32.totalorder %s321, %s323
      %p330 = scmp.eq.s32.totalorder %s26, 1
      %p331 = por %p329, %p330
      %p332 = scmp.ne.s32.totalorder %s323, %s324
      %p333 = scmp.eq.s32.totalorder %s26, 0
      %p334 = por %p332, %p333
      %p335 = scmp.ne.s32.totalorder %s323, %s324
      %p336 = scmp.eq.s32.totalorder %s27, 1
      %p337 = por %p335, %p336
      %p339 = scmp.ne.s32.totalorder %s324, %s338
      %p340 = scmp.eq.s32.totalorder %s27, 0
      %p341 = por %p339, %p340
      %p342 = scmp.le.s32.totalorder 1, %s21
      %p343 = scmp.lt.s32.totalorder %s21, 3
      %p344 = pnand %p342, %p343
      %p345 = pneg %p344
      // Predicated region
      $region9: #{tpu_custom_call.1} parent=5 // pred_check
        _
      $region10: #{tpu_custom_call.1} parent=5 // pred_check_branch
        %347 = sbr.rel (%p344) target = $region12
      $region11: #{tpu_custom_call.1} parent=5 // pred_region
        %s348 = ssub.s32 %s21, 1
        // Predicated region
        $region13: #{tpu_custom_call.1} parent=11 // pred_check
          %p349 = pneg %p82
        $region14: #{tpu_custom_call.1} parent=11 // pred_check_branch
          %351 = sbr.rel (%p349) target = $region16
        $region15: #{tpu_custom_call.1} parent=11 // pred_region
          _
        $region16: #{tpu_custom_call.1} parent=11 // pred_fallthru
          _
        // Predicated region
        $region17: #{tpu_custom_call.1} parent=11 // pred_check
          %p352 = pneg %p103
        $region18: #{tpu_custom_call.1} parent=11 // pred_check_branch
          %354 = sbr.rel (%p352) target = $region20
        $region19: #{tpu_custom_call.1} parent=11 // pred_region
          _
        $region20: #{tpu_custom_call.1} parent=11 // pred_fallthru
          _
        // Predicated region
        $region21: #{tpu_custom_call.1} parent=11 // pred_check
          %p355 = pneg %p124
        $region22: #{tpu_custom_call.1} parent=11 // pred_check_branch
          %357 = sbr.rel (%p355) target = $region24
        $region23: #{tpu_custom_call.1} parent=11 // pred_region
          _
        $region24: #{tpu_custom_call.1} parent=11 // pred_fallthru
          _
        // Predicated region
        $region25: #{tpu_custom_call.1} parent=11 // pred_check
          %p358 = pneg %p145
        $region26: #{tpu_custom_call.1} parent=11 // pred_check_branch
          %360 = sbr.rel (%p358) target = $region28
        $region27: #{tpu_custom_call.1} parent=11 // pred_region
          _
        $region28: #{tpu_custom_call.1} parent=11 // pred_fallthru
          _
        // Predicated region
        $region29: #{tpu_custom_call.1} parent=11 // pred_check
          %p361 = pneg %p166
        $region30: #{tpu_custom_call.1} parent=11 // pred_check_branch
          %363 = sbr.rel (%p361) target = $region32
        $region31: #{tpu_custom_call.1} parent=11 // pred_region
          _
        $region32: #{tpu_custom_call.1} parent=11 // pred_fallthru
          _
        // Predicated region
        $region33: #{tpu_custom_call.1} parent=11 // pred_check
          %p364 = pneg %p187
        $region34: #{tpu_custom_call.1} parent=11 // pred_check_branch
          %366 = sbr.rel (%p364) target = $region36
        $region35: #{tpu_custom_call.1} parent=11 // pred_region
          _
        $region36: #{tpu_custom_call.1} parent=11 // pred_fallthru
          _
        // Predicated region
        $region37: #{tpu_custom_call.1} parent=11 // pred_check
          %p367 = pneg %p208
        $region38: #{tpu_custom_call.1} parent=11 // pred_check_branch
          %369 = sbr.rel (%p367) target = $region40
        $region39: #{tpu_custom_call.1} parent=11 // pred_region
          _
        $region40: #{tpu_custom_call.1} parent=11 // pred_fallthru
          _
        // Predicated region
        $region41: #{tpu_custom_call.1} parent=11 // pred_check
          %p370 = pneg %p229
        $region42: #{tpu_custom_call.1} parent=11 // pred_check_branch
          %372 = sbr.rel (%p370) target = $region44
        $region43: #{tpu_custom_call.1} parent=11 // pred_region
          _
        $region44: #{tpu_custom_call.1} parent=11 // pred_fallthru
          _
      $region12: #{tpu_custom_call.1} parent=5 // pred_fallthru
        _
      %p373 = scmp.lt.s32.totalorder %s21, 2
      // Predicated region
      $region45: #{tpu_custom_call.1} parent=5 // pred_check
        %p374 = pneg %p373
      $region46: #{tpu_custom_call.1} parent=5 // pred_check_branch
        %376 = sbr.rel (%p374) target = $region48
      $region47: #{tpu_custom_call.1} parent=5 // pred_region
        // Predicated region
        $region49: #{tpu_custom_call.1} parent=47 // pred_check
          %p377 = pneg %p55
        $region50: #{tpu_custom_call.1} parent=47 // pred_check_branch
          %379 = sbr.rel (%p377) target = $region52
        $region51: #{tpu_custom_call.1} parent=47 // pred_region
          %s380 = smul.u32 2, %s29
          %p381 = scmp.lt.s32.totalorder %s28, 1
          %s382 = scalar_select %p381, %s28, 1
          %p383 = scmp.lt.s32.totalorder %s380, 1
          %s384 = scalar_select %p383, %s380, 1
          %s385 = smul.addr %s382, 2
          %s386 = sadd.s32 %s384, %s385
          %s387 = smul.addr %s386, 4
          %s388 = scalar_lea.vmem %s0, %s387
          %s389 = smul.u32 2, %s29
        $region52: #{tpu_custom_call.1} parent=47 // pred_fallthru
          _
      $region48: #{tpu_custom_call.1} parent=5 // pred_fallthru
        _
      %p390 = scmp.le.s32.totalorder 1, %s21
      %p391 = scmp.lt.s32.totalorder %s21, 3
      %p392 = pnand %p390, %p391
      %p393 = pneg %p392
      // Predicated region
      $region53: #{tpu_custom_call.1} parent=5 // pred_check
        _
      $region54: #{tpu_custom_call.1} parent=5 // pred_check_branch
        %395 = sbr.rel (%p392) target = $region56
      $region55: #{tpu_custom_call.1} parent=5 // pred_region
        %s396 = ssub.s32 %s21, 1
        %s397 = smul.u32 2, %s31
        %p398 = scmp.lt.s32.totalorder %s30, 1
        %s399 = scalar_select %p398, %s30, 1
        %p400 = scmp.lt.s32.totalorder %s397, 1
        %s401 = scalar_select %p400, %s397, 1
        %s402 = smul.addr %s399, 2
        %s403 = sadd.s32 %s401, %s402
        %s404 = smul.addr %s403, 4
        %s405 = scalar_lea.vmem %s0, %s404
        %p406 = pneg %p61
        %p407 = pneg %p58
        %p408 = pneg %p82
        %p409 = pneg %p79
        %p410 = pneg %p103
        %p411 = pneg %p100
        %p412 = pneg %p124
        %p413 = pneg %p121
        %p414 = pneg %p145
        %p415 = pneg %p142
        %p416 = pneg %p166
        %p417 = pneg %p163
        %p418 = pneg %p187
        %p419 = pneg %p184
        %p420 = pneg %p208
        %p421 = pneg %p205
        %p422 = pneg %p229
        %p423 = pneg %p226
        %p424 = pneg %p250
        %p425 = pneg %p247
        %p426 = pneg %p271
        %p427 = pneg %p268
        %p428 = pneg %p292
        %p429 = pneg %p289
        %p430 = pneg %p313
        %p431 = pneg %p310
        %p432 = pneg %p334
        %p433 = pneg %p331
        %s434 = smul.u32 2, %s31
        %p435 = scmp.lt.s32.totalorder %s30, 1
        %s436 = scalar_select %p435, %s30, 1
        %p437 = scmp.lt.s32.totalorder %s434, 1
        %s438 = scalar_select %p437, %s434, 1
        %s439 = smul.addr %s436, 2
        %s440 = sadd.s32 %s438, %s439
        %s441 = smul.addr %s440, 4
        %s442 = scalar_lea.vmem %s0, %s441
        %s443 = smul.u32 2, %s31
        %p444 = scmp.eq.s32.totalorder %s30, 0
        %p445 = scmp.eq.s32.totalorder %s31, 0
        %p446 = pnand %p444, %p445
        %p447 = pneg %p446
        %p448 = scmp.eq.s32.totalorder %s30, 1
        %p449 = pnand %p448, %p445
        %p450 = pneg %p449
        // Predicated region
        $region57: #{tpu_custom_call.1} parent=55 // pred_check
          _
        $region58: #{tpu_custom_call.1} parent=55 // pred_check_branch
          %452 = sbr.rel (%p446) target = $region60
        $region59: #{tpu_custom_call.1} parent=55 // pred_region
          %vm453 = vcmask 3072
          %454 = vst.msk [vmem:[#allocation2] sm:$0xf] %vm453, 0.0
          %455 = vst.msk [vmem:[#allocation3] sm:$0xf] %vm453, 0.0
        $region60: #{tpu_custom_call.1} parent=55 // pred_fallthru
          _
        %v456 = vld [vmem:[%s442] sm:$0xff]
        %v457 = vld [vmem:[#allocation2] sm:$0xf]
        %v459 = vcombine.high %v456, %v456
        %vm461 = vcmask 1043456
        %v462 = vsel %vm461, %v456, 0.0
        %v463 = vsel %vm461, %v459, 0.0
        %v464 = vadd.f32 %v462, %v463
        %465 = vadd.xlane.f32.xlu0 %v464
        %v466 = vpop.xlane.xlu0 %465
        %v467 = vadd.f32 %v457, %v466
        %vm468 = vcmask 3072
        %469 = vst.msk [vmem:[#allocation2] sm:$0xf] %vm468, %v467
        %v470 = vld [vmem:[#allocation3] sm:$0xf]
        %v471 = vmul.f32 %v456, %v456
        %v473 = vcombine.high %v471, %v471
        %v475 = vsel %vm461, %v471, 0.0
        %v476 = vsel %vm461, %v473, 0.0
        %v477 = vadd.f32 %v475, %v476
        %478 = vadd.xlane.f32.xlu0 %v477
        %v479 = vpop.xlane.xlu0 %478
        %v480 = vadd.f32 %v470, %v479
        %481 = vst.msk [vmem:[#allocation3] sm:$0xf] %vm468, %v480
        // Predicated region
        $region61: #{tpu_custom_call.1} parent=55 // pred_check
          _
        $region62: #{tpu_custom_call.1} parent=55 // pred_check_branch
          %483 = sbr.rel (%p449) target = $region64
        $region63: #{tpu_custom_call.1} parent=55 // pred_region
          %v484 = vld [vmem:[#allocation2] sm:$0xf]
          %v485 = vmul.f32 %v484, 0.001953125
          %v486 = vld [vmem:[#allocation3] sm:$0xf]
          %v487 = vmul.f32 %v486, 0.001953125
          %v488 = vmul.f32 %v485, %v485
          %v489 = vsub.f32 %v487, %v488
          %v490 = vmax.f32 %v489, 0.0
          %v491 = vld [vmem:[%s1] sm:$0xf]
          %v492 = vld [vmem:[%s2] sm:$0xf]
          %v493 = vld [vmem:[%s3] sm:$0xf]
          %v494 = vld [vmem:[%s4] sm:$0xf]
          %v495 = vld [vmem:[%s5] sm:$0xf]
          %v496 = vld [vmem:[%s6] sm:$0xf]
          %v497 = vmax.f32 %v492, 0.0
          %v498 = vand.u32 2147483647, %v492
          %v499 = vsub.f32 0.0, %v498
          %v500 = vmul.f32 %v499, 1.442695
          %v501 = vpow.pop %v500
          %v502 = vadd.f32 %v501, 1.0
          %v503 = vlog2.pop %v502
          %v504 = vmul.f32 %v503, 0.6931472
          %v505 = vmul.f32 -0.5, %v501
          %v506 = vadd.f32 %v505, 1.0
          %v507 = vmul.f32 %v506, %v501
          %v508 = vand.u32 2147483647, %v501
          %vm509 = vcmp.lt.f32.partialorder %v508, 0.0004427343
          %v510 = vsel %vm509, %v507, %v504
          %v511 = vadd.f32 %v497, %v510
          %v512 = vmax.f32 %v495, 0.0
          %v513 = vand.u32 2147483647, %v495
          %v514 = vsub.f32 0.0, %v513
          %v515 = vmul.f32 %v514, 1.442695
          %v516 = vpow.pop %v515
          %v517 = vadd.f32 %v516, 1.0
          %v518 = vlog2.pop %v517
          %v519 = vmul.f32 %v518, 0.6931472
          %v520 = vmul.f32 -0.5, %v516
          %v521 = vadd.f32 %v520, 1.0
          %v522 = vmul.f32 %v521, %v516
          %v523 = vand.u32 2147483647, %v516
          %vm524 = vcmp.lt.f32.partialorder %v523, 0.0004427343
          %v525 = vsel %vm524, %v522, %v519
          %v526 = vadd.f32 %v512, %v525
          %v527 = vmul.f32 %v511, %v493
          %v528 = vadd.f32 %v491, %v527
          %v529 = vmul.f32 %v526, %v496
          %v530 = vadd.f32 %v494, %v529
          %v531 = vadd.f32 %v490, 1e-05
          %v532 = vrsqrt.pop %v531
          %v533 = vmul.f32 %v532, %v528
          %534 = vst.msk [vmem:[%s9] sm:$0xf] %vm468, %v533
          %v535 = vmul.f32 %v485, %v533
          %v536 = vsub.f32 %v530, %v535
          %537 = vst.msk [vmem:[%s10] sm:$0xf] %vm468, %v536
          %v538 = vlog2.pop %v511
          %v539 = vmul.f32 %v538, 0.6931472
          %v540 = vsub.f32 0.0, %v539
          %v541 = vmul.f32 %v511, %v511
          %v542 = vmul.f32 %v491, %v491
          %v543 = vadd.f32 %v541, %v542
          %v544 = vmul.f32 %v543, 0.5
          %v545 = vadd.f32 %v540, %v544
          %v546 = vsub.f32 %v545, 0.5
          %v547 = vlog2.pop %v526
          %v548 = vmul.f32 %v547, 0.6931472
          %v549 = vsub.f32 0.0, %v548
          %v550 = vmul.f32 %v526, %v526
          %v551 = vmul.f32 %v494, %v494
          %v552 = vadd.f32 %v550, %v551
          %v553 = vmul.f32 %v552, 0.5
          %v554 = vadd.f32 %v549, %v553
          %v555 = vsub.f32 %v554, 0.5
          %v556 = vsel %vm468, %v546, 0.0
          %557 = vadd.xlane.f32.xlu0 %v556
          %v558 = vpop.xlane.xlu0 %557
          %v559 = vrot.slane %v558, 4
          %v560 = vadd.f32 %v558, %v559
          %v561 = vrot.slane %v560, 2
          %v562 = vadd.f32 %v560, %v561
          %v563 = vrot.slane %v562, 1
          %v564 = vadd.f32 %v562, %v563
          %s565 = vtos %v564
          %v566 = vsel %vm468, %v555, 0.0
          %567 = vadd.xlane.f32.xlu0 %v566
          %v568 = vpop.xlane.xlu0 %567
          %v569 = vrot.slane %v568, 4
          %v570 = vadd.f32 %v568, %v569
          %v571 = vrot.slane %v570, 2
          %v572 = vadd.f32 %v570, %v571
          %v573 = vrot.slane %v572, 1
          %v574 = vadd.f32 %v572, %v573
          %s575 = vtos %v574
          %s576 = sadd.f32 %s565, %s575
          %v577 = vstv %s576
          %vm578 = vcmask 0
          %579 = vst.msk [vmem:[#allocation4] sm:$0x1] %vm578, %v577
          %v580 = vmul.f32 %v490, 1.0019569
          %v581 = vld [vmem:[%s7] sm:$0xf]
          %v582 = vmul.f32 %v581, 0.9
          %v583 = vmul.f32 %v485, 0.1
          %v584 = vadd.f32 %v582, %v583
          %585 = vst.msk [vmem:[%s12] sm:$0xf] %vm468, %v584
          %v586 = vld [vmem:[%s8] sm:$0xf]
          %v587 = vmul.f32 %v586, 0.9
          %v588 = vmul.f32 %v580, 0.1
          %v589 = vadd.f32 %v587, %v588
          %590 = vst.msk [vmem:[%s13] sm:$0xf] %vm468, %v589
        $region64: #{tpu_custom_call.1} parent=55 // pred_fallthru
          _
        // Predicated region
        $region65: #{tpu_custom_call.1} parent=55 // pred_check
          %p591 = pneg %p247
        $region66: #{tpu_custom_call.1} parent=55 // pred_check_branch
          %593 = sbr.rel (%p591) target = $region68
        $region67: #{tpu_custom_call.1} parent=55 // pred_region
          _
        $region68: #{tpu_custom_call.1} parent=55 // pred_fallthru
          _
        // Predicated region
        $region69: #{tpu_custom_call.1} parent=55 // pred_check
          %p594 = pneg %p268
        $region70: #{tpu_custom_call.1} parent=55 // pred_check_branch
          %596 = sbr.rel (%p594) target = $region72
        $region71: #{tpu_custom_call.1} parent=55 // pred_region
          _
        $region72: #{tpu_custom_call.1} parent=55 // pred_fallthru
          _
        // Predicated region
        $region73: #{tpu_custom_call.1} parent=55 // pred_check
          %p597 = pneg %p289
        $region74: #{tpu_custom_call.1} parent=55 // pred_check_branch
          %599 = sbr.rel (%p597) target = $region76
        $region75: #{tpu_custom_call.1} parent=55 // pred_region
          %s601 = ssub.s32 16, 16
          %602 = vsyncadd [#allocation5], %s601
          %s604 = sshll.u32 [#allocation4], 4
          %s605 = int_to_ptr.vmem [resolvable:$true] %s604
          %607 = dma.vmem_to_hbm [thread:$0]  %s605, 16, %s11, [#allocation5]
        $region76: #{tpu_custom_call.1} parent=55 // pred_fallthru
          _
        // Predicated region
        $region77: #{tpu_custom_call.1} parent=55 // pred_check
          %p608 = pneg %p310
        $region78: #{tpu_custom_call.1} parent=55 // pred_check_branch
          %610 = sbr.rel (%p608) target = $region80
        $region79: #{tpu_custom_call.1} parent=55 // pred_region
          _
        $region80: #{tpu_custom_call.1} parent=55 // pred_fallthru
          _
        // Predicated region
        $region81: #{tpu_custom_call.1} parent=55 // pred_check
          %p611 = pneg %p331
        $region82: #{tpu_custom_call.1} parent=55 // pred_check_branch
          %613 = sbr.rel (%p611) target = $region84
        $region83: #{tpu_custom_call.1} parent=55 // pred_region
          _
        $region84: #{tpu_custom_call.1} parent=55 // pred_fallthru
          _
        // Predicated region
        $region85: #{tpu_custom_call.1} parent=55 // pred_check
          %p614 = pneg %p247
        $region86: #{tpu_custom_call.1} parent=55 // pred_check_branch
          %616 = sbr.rel (%p614) target = $region88
        $region87: #{tpu_custom_call.1} parent=55 // pred_region
          _
        $region88: #{tpu_custom_call.1} parent=55 // pred_fallthru
          _
        // Predicated region
        $region89: #{tpu_custom_call.1} parent=55 // pred_check
          %p617 = pneg %p268
        $region90: #{tpu_custom_call.1} parent=55 // pred_check_branch
          %619 = sbr.rel (%p617) target = $region92
        $region91: #{tpu_custom_call.1} parent=55 // pred_region
          _
        $region92: #{tpu_custom_call.1} parent=55 // pred_fallthru
          _
        // Predicated region
        $region93: #{tpu_custom_call.1} parent=55 // pred_check
          %p620 = pneg %p289
        $region94: #{tpu_custom_call.1} parent=55 // pred_check_branch
          %622 = sbr.rel (%p620) target = $region96
        $region95: #{tpu_custom_call.1} parent=55 // pred_region
          %623 = dma.done [#allocation5], 16
        $region96: #{tpu_custom_call.1} parent=55 // pred_fallthru
          _
        // Predicated region
        $region97: #{tpu_custom_call.1} parent=55 // pred_check
          %p624 = pneg %p310
        $region98: #{tpu_custom_call.1} parent=55 // pred_check_branch
          %626 = sbr.rel (%p624) target = $region100
        $region99: #{tpu_custom_call.1} parent=55 // pred_region
          _
        $region100: #{tpu_custom_call.1} parent=55 // pred_fallthru
          _
        // Predicated region
        $region101: #{tpu_custom_call.1} parent=55 // pred_check
          %p627 = pneg %p331
        $region102: #{tpu_custom_call.1} parent=55 // pred_check_branch
          %629 = sbr.rel (%p627) target = $region104
        $region103: #{tpu_custom_call.1} parent=55 // pred_region
          _
        $region104: #{tpu_custom_call.1} parent=55 // pred_fallthru
          _
      $region56: #{tpu_custom_call.1} parent=5 // pred_fallthru
        _
      %p630 = scmp.le.s32.totalorder 2, %s21
      // Predicated region
      $region105: #{tpu_custom_call.1} parent=5 // pred_check
        %p631 = pneg %p630
      $region106: #{tpu_custom_call.1} parent=5 // pred_check_branch
        %633 = sbr.rel (%p631) target = $region108
      $region107: #{tpu_custom_call.1} parent=5 // pred_region
        %s634 = ssub.s32 %s21, 2
      $region108: #{tpu_custom_call.1} parent=5 // pred_fallthru
        _
    $region6: #{tpu_custom_call.1} parent=1 // loop_footer
      %s25 = sadd.s32 1, %s21
    $region7: #{tpu_custom_call.1} parent=1 // loop_footer_branch
      %20 = sbr.rel target = $region3
    $region8: #{tpu_custom_call.1} parent=1 // loop_exit
      _
    %635 = vsyncpa [#allocation5], 1
    %s636 = scalar_lea.sflag [#allocation5], 1
    %637 = vsyncpa %s636, 1

</llo_original>
